<compile_context>
chip_gen: v7x
topology: tpu7x:2x2x1
jax: 0.10.0
libtpu: 0.0.40
codegen_flags: <defaults>
</compile_context>

<pallas_src>
import functools

import jax
import jax.numpy as jnp
from jax.experimental import pallas as pl
from jax.experimental.pallas import tpu as pltpu


def _bidfsmn_kernel(x_ref, w_dw_ref, b_dw_ref, w1_ref, b1_ref, alpha_ref,
                    w2_ref, b2_ref, out_ref, xpad_scr, *, dilation, pad_l):
    """One batch element per grid step, channel-major (C, T) tiles.

    x_ref     : (1, C, T)      input block (NCW, unpadded)
    w_dw_ref  : (C, K)         depthwise conv taps (Conv1d weight squeezed)
    b_dw_ref  : (C, 1)         depthwise conv bias
    w1_ref    : (H, C) b1_ref: (H, 1)   Linear(C->H)   (PyTorch weight layout)
    alpha_ref : (1, 1) SMEM    PReLU shared slope
    w2_ref    : (C, H) b2_ref: (C, 1)   Linear(H->C)
    out_ref   : (1, C, T)
    xpad_scr  : (C, T + pad_l + pad_r) f32 VMEM scratch (padded time window)
    """
    C = x_ref.shape[1]
    T = x_ref.shape[2]
    K = w_dw_ref.shape[1]
    T_pad = xpad_scr.shape[1]
    pad_r = T_pad - T - pad_l

    x = x_ref[0].astype(jnp.float32)                    # (C, T)

    # Build the time halo in VMEM (replaces a wrapper-side jnp.pad HBM copy).
    if pad_l > 0:
        xpad_scr[:, 0:pad_l] = jnp.zeros((C, pad_l), jnp.float32)
    if pad_r > 0:
        xpad_scr[:, pad_l + T:T_pad] = jnp.zeros((C, pad_r), jnp.float32)
    xpad_scr[:, pad_l:pad_l + T] = x

    # Depthwise dilated conv along time (lane axis), f32 VPU path.
    #   conv[c, t] = b_dw[c] + sum_k w_dw[c, k] * xpad[c, t + k*dilation]
    # K is small & static -> Python-unrolled; the centre tap (offset == pad_l)
    # is x itself, so reuse the vreg instead of a shifted re-load.
    acc = jnp.zeros((C, T), jnp.float32)
    for k in range(K):
        off = k * dilation
        tap = x if off == pad_l else xpad_scr[:, off:off + T]
        acc = acc + tap * w_dw_ref[:, k:k + 1]
    mem = acc + b_dw_ref[...] + x                        # first residual, (C, T) f32

    # fc_trans in channel-major form:
    #   h  = W1 @ mem + b1          (H, T)
    #   fc = W2 @ prelu(h) + b2     (C, T)
    cdt = w1_ref.dtype                                   # bf16 or f32 MXU operands
    h = jnp.dot(w1_ref[...], mem.astype(cdt),
                preferred_element_type=jnp.float32) + b1_ref[...]
    alpha = alpha_ref[0, 0]                              # scalar from SMEM
    h = jnp.where(h > 0, h, h * alpha)                   # PReLU (shared alpha), f32
    fc = jnp.dot(w2_ref[...], h.astype(cdt),
                 preferred_element_type=jnp.float32) + b2_ref[...]

    out_ref[0] = (fc + mem).astype(out_ref.dtype)        # second residual add


def bidfsmn_forward(x_bct, params, left_kernel_size, right_kernel_size,
                    dilation, *, use_bf16_matmul=True):
    """x_bct: (B, C, T) float32, PyTorch Conv1d NCW layout (no transposes)."""
    B, C, T = x_bct.shape
    K = left_kernel_size + right_kernel_size + 1
    H = params["w1"].shape[0]
    pad_l = left_kernel_size * dilation
    pad_r = right_kernel_size * dilation
    T_pad = T + pad_l + pad_r

    cdt = jnp.bfloat16 if use_bf16_matmul else jnp.float32
    w1 = params["w1"].astype(cdt)                        # MXU operands only
    w2 = params["w2"].astype(cdt)

    kernel = functools.partial(_bidfsmn_kernel, dilation=dilation, pad_l=pad_l)

    act_bytes = int(x_bct.size) * x_bct.dtype.itemsize
    weight_bytes = sum(int(v.size) * v.dtype.itemsize
                       for v in (params["w_dw"], params["b_dw"], w1,
                                 params["b1"], params["alpha"], w2,
                                 params["b2"]))
    cost = pl.CostEstimate(
        flops=int(B * T * (4 * C * H + 2 * C * K + 4 * C)),
        transcendentals=0,
        bytes_accessed=int(2 * act_bytes + weight_bytes))

    out = pl.pallas_call(
        kernel,
        out_shape=jax.ShapeDtypeStruct((B, C, T), x_bct.dtype),
        grid=(B,),
        in_specs=[
            pl.BlockSpec((1, C, T), lambda b: (b, 0, 0)),        # activations
            pl.BlockSpec((C, K), lambda b: (0, 0)),              # depthwise taps
            pl.BlockSpec((C, 1), lambda b: (0, 0)),              # depthwise bias
            pl.BlockSpec((H, C), lambda b: (0, 0)),              # w1
            pl.BlockSpec((H, 1), lambda b: (0, 0)),              # b1
            pl.BlockSpec(memory_space=pltpu.MemorySpace.SMEM),   # prelu alpha
            pl.BlockSpec((C, H), lambda b: (0, 0)),              # w2
            pl.BlockSpec((C, 1), lambda b: (0, 0)),              # b2
        ],
        out_specs=pl.BlockSpec((1, C, T), lambda b: (b, 0, 0)),
        scratch_shapes=[pltpu.VMEM((C, T_pad), jnp.float32)],
        compiler_params=pltpu.CompilerParams(
            dimension_semantics=("parallel",),                   # megacore over batch
            vmem_limit_bytes=32 * 1024 * 1024),
        cost_estimate=cost,
    )(x_bct, params["w_dw"], params["b_dw"], w1, params["b1"],
      params["alpha"], w2, params["b2"])

    return out


def _reference(x_bct, params, L, R, d):
    """Pure-JAX reference reproducing the PyTorch forward semantics (f32)."""
    B, C, T = x_bct.shape
    K = L + R + 1
    xpad = jnp.pad(x_bct, ((0, 0), (0, 0), (L * d, R * d)))
    conv = jnp.zeros_like(x_bct) + params["b_dw"][None, :, :]
    for k in range(K):
        conv = conv + xpad[:, :, k * d:k * d + T] * params["w_dw"][None, :, k:k + 1]
    mem = conv + x_bct                                    # (B, C, T)
    mem_t = jnp.transpose(mem, (0, 2, 1))                 # (B, T, C)
    h = mem_t @ params["w1"].T + params["b1"][:, 0]
    h = jnp.where(h > 0, h, h * params["alpha"][0, 0])
    fc = h @ params["w2"].T + params["b2"][:, 0]
    return jnp.transpose(fc, (0, 2, 1)) + mem


def _init_params(key, hidden_size, backbone_memory_size, K):
    """Deterministic synthetic params matching the nn.Module's shapes."""
    C, H = backbone_memory_size, hidden_size
    k1, k2, k3, k4, k5, k6 = jax.random.split(key, 6)
    return {
        # Conv1d(C, C, K, groups=C): weight (C, 1, K) -> stored as (C, K)
        "w_dw": jax.random.normal(k1, (C, K), jnp.float32) * 0.2,
        "b_dw": jax.random.normal(k2, (C, 1), jnp.float32) * 0.1,
        # Linear(C, H): PyTorch weight layout (H, C)
        "w1": jax.random.normal(k3, (H, C), jnp.float32) * 0.1,
        "b1": jax.random.normal(k4, (H, 1), jnp.float32) * 0.1,
        # PReLU default: single shared parameter, init 0.25
        "alpha": jnp.full((1, 1), 0.25, jnp.float32),
        # Linear(H, C): PyTorch weight layout (C, H)
        "w2": jax.random.normal(k5, (C, H), jnp.float32) * 0.1,
        "b2": jax.random.normal(k6, (C, 1), jnp.float32) * 0.1,
    }


if __name__ == "__main__":
    # Small shapes consistent with the module's forward; T=128 keeps the output
    # block lane-dense (unmasked vst) without being large.
    B = 2
    backbone_memory_size = 16     # C (conv channels / memory size)
    hidden_size = 32              # H
    T = 128                       # sequence length
    left_kernel_size = 2
    right_kernel_size = 1
    dilation = 2
    K = left_kernel_size + right_kernel_size + 1

    key = jax.random.PRNGKey(0)
    kx, kp = jax.random.split(key)
    x = jax.random.normal(kx, (B, backbone_memory_size, T), jnp.float32)
    params = _init_params(kp, hidden_size, backbone_memory_size, K)

    ref = _reference(x, params, left_kernel_size, right_kernel_size, dilation)

    # f32 MXU path: strict check against the reference.
    out_f32 = bidfsmn_forward(x, params, left_kernel_size, right_kernel_size,
                              dilation, use_bf16_matmul=False)
    out_f32 = jax.block_until_ready(out_f32)
    assert out_f32.shape == x.shape
    assert jnp.allclose(out_f32, ref, atol=1e-4, rtol=1e-4), "f32 mismatch vs reference"

    # bf16 MXU operands / f32 accumulate: looser tolerance.
    out_bf16 = bidfsmn_forward(x, params, left_kernel_size, right_kernel_size,
                               dilation, use_bf16_matmul=True)
    out_bf16 = jax.block_until_ready(out_bf16)
    assert jnp.allclose(out_bf16, ref, atol=5e-2, rtol=5e-2), "bf16 mismatch vs reference"

    print("KERNEL_OK")
</pallas_src>

<mosaic_0001>
module attributes {stable_mosaic.version = 11 : i64} {
  func.func @_bidfsmn_kernel(%arg0: i32, %arg1: memref<1x16x128xf32, #tpu.memory_space<vmem>>, %arg2: memref<16x4xf32, #tpu.memory_space<vmem>>, %arg3: memref<16x1xf32, #tpu.memory_space<vmem>>, %arg4: memref<32x16xf32, #tpu.memory_space<vmem>>, %arg5: memref<32x1xf32, #tpu.memory_space<vmem>>, %arg6: memref<1x1xf32, #tpu.memory_space<smem>>, %arg7: memref<16x32xf32, #tpu.memory_space<vmem>>, %arg8: memref<16x1xf32, #tpu.memory_space<vmem>>, %arg9: memref<1x16x128xf32, #tpu.memory_space<vmem>>, %arg10: memref<16x134xf32, #tpu.memory_space<vmem>>) attributes {dimension_semantics = [#tpu.dimension_semantics<parallel>], iteration_bounds = array<i64: 2>, scalar_prefetch = 0 : i64, scratch_operands = 1 : i64, tpu.core_type = #tpu.core_type<tc>, window_params = [{transform_indices = @transform_0, window_bounds = array<i64: 1, 16, 128>}, {pipeline_mode = #tpu.pipeline_mode<synchronous>, transform_indices = @transform_1, window_bounds = array<i64: 16, 4>}, {pipeline_mode = #tpu.pipeline_mode<synchronous>, transform_indices = @transform_2, window_bounds = array<i64: 16, 1>}, {pipeline_mode = #tpu.pipeline_mode<synchronous>, transform_indices = @transform_3, window_bounds = array<i64: 32, 16>}, {pipeline_mode = #tpu.pipeline_mode<synchronous>, transform_indices = @transform_4, window_bounds = array<i64: 32, 1>}, {transform_indices = @transform_5, window_bounds = array<i64: 1, 1>}, {pipeline_mode = #tpu.pipeline_mode<synchronous>, transform_indices = @transform_6, window_bounds = array<i64: 16, 32>}, {pipeline_mode = #tpu.pipeline_mode<synchronous>, transform_indices = @transform_7, window_bounds = array<i64: 16, 1>}, {transform_indices = @transform_8, window_bounds = array<i64: 1, 16, 128>}]} {
    %c0 = arith.constant 0 : index
    %c0_0 = arith.constant 0 : index
    %c0_1 = arith.constant 0 : index
    %0 = vector.load %arg1[%c0, %c0_0, %c0_1] : memref<1x16x128xf32, #tpu.memory_space<vmem>>, vector<1x16x128xf32>
    %1 = vector.shape_cast %0 : vector<1x16x128xf32> to vector<16x128xf32>
    %cst = arith.constant 0.000000e+00 : f32
    %2 = vector.broadcast %cst : f32 to vector<16x4xf32>
    %c0_2 = arith.constant 0 : index
    %c0_3 = arith.constant 0 : index
    %3 = vector.load %arg10[%c0_2, %c0_3] : memref<16x134xf32, #tpu.memory_space<vmem>>, vector<16x4xf32>
    tpu.vector_store %arg10[%c0_2, %c0_3], %2 {strides = array<i32>} : memref<16x134xf32, #tpu.memory_space<vmem>>, vector<16x4xf32>,
    %cst_4 = arith.constant 0.000000e+00 : f32
    %4 = vector.broadcast %cst_4 : f32 to vector<16x2xf32>
    %c0_5 = arith.constant 0 : index
    %c132 = arith.constant 132 : index
    %5 = vector.load %arg10[%c0_5, %c132] : memref<16x134xf32, #tpu.memory_space<vmem>>, vector<16x2xf32>
    tpu.vector_store %arg10[%c0_5, %c132], %4 {strides = array<i32>} : memref<16x134xf32, #tpu.memory_space<vmem>>, vector<16x2xf32>,
    %c0_6 = arith.constant 0 : index
    %c4 = arith.constant 4 : index
    %6 = vector.load %arg10[%c0_6, %c4] : memref<16x134xf32, #tpu.memory_space<vmem>>, vector<16x128xf32>
    tpu.vector_store %arg10[%c0_6, %c4], %1 {strides = array<i32>} : memref<16x134xf32, #tpu.memory_space<vmem>>, vector<16x128xf32>,
    %cst_7 = arith.constant 0.000000e+00 : f32
    %7 = vector.broadcast %cst_7 : f32 to vector<16x128xf32>
    %c0_8 = arith.constant 0 : index
    %c0_9 = arith.constant 0 : index
    %8 = vector.load %arg10[%c0_8, %c0_9] : memref<16x134xf32, #tpu.memory_space<vmem>>, vector<16x128xf32>
    %c0_10 = arith.constant 0 : index
    %c0_11 = arith.constant 0 : index
    %9 = vector.load %arg2[%c0_10, %c0_11] : memref<16x4xf32, #tpu.memory_space<vmem>>, vector<16x1xf32>
    %10 = vector.broadcast %9 : vector<16x1xf32> to vector<16x128xf32>
    %11 = arith.mulf %8, %10 : vector<16x128xf32>
    %12 = arith.addf %7, %11 : vector<16x128xf32>
    %c0_12 = arith.constant 0 : index
    %c2 = arith.constant 2 : index
    %13 = vector.load %arg10[%c0_12, %c2] : memref<16x134xf32, #tpu.memory_space<vmem>>, vector<16x128xf32>
    %c0_13 = arith.constant 0 : index
    %c1 = arith.constant 1 : index
    %14 = vector.load %arg2[%c0_13, %c1] : memref<16x4xf32, #tpu.memory_space<vmem>>, vector<16x1xf32>
    %15 = vector.broadcast %14 : vector<16x1xf32> to vector<16x128xf32>
    %16 = arith.mulf %13, %15 : vector<16x128xf32>
    %17 = arith.addf %12, %16 : vector<16x128xf32>
    %c0_14 = arith.constant 0 : index
    %c2_15 = arith.constant 2 : index
    %18 = vector.load %arg2[%c0_14, %c2_15] : memref<16x4xf32, #tpu.memory_space<vmem>>, vector<16x1xf32>
    %19 = vector.broadcast %18 : vector<16x1xf32> to vector<16x128xf32>
    %20 = arith.mulf %1, %19 : vector<16x128xf32>
    %21 = arith.addf %17, %20 : vector<16x128xf32>
    %c0_16 = arith.constant 0 : index
    %c6 = arith.constant 6 : index
    %22 = vector.load %arg10[%c0_16, %c6] : memref<16x134xf32, #tpu.memory_space<vmem>>, vector<16x128xf32>
    %c0_17 = arith.constant 0 : index
    %c3 = arith.constant 3 : index
    %23 = vector.load %arg2[%c0_17, %c3] : memref<16x4xf32, #tpu.memory_space<vmem>>, vector<16x1xf32>
    %24 = vector.broadcast %23 : vector<16x1xf32> to vector<16x128xf32>
    %25 = arith.mulf %22, %24 : vector<16x128xf32>
    %26 = arith.addf %21, %25 : vector<16x128xf32>
    %c0_18 = arith.constant 0 : index
    %c0_19 = arith.constant 0 : index
    %27 = vector.load %arg3[%c0_18, %c0_19] : memref<16x1xf32, #tpu.memory_space<vmem>>, vector<16x1xf32>
    %28 = vector.broadcast %27 : vector<16x1xf32> to vector<16x128xf32>
    %29 = arith.addf %26, %28 : vector<16x128xf32>
    %30 = arith.addf %29, %1 : vector<16x128xf32>
    %c0_20 = arith.constant 0 : index
    %c0_21 = arith.constant 0 : index
    %31 = vector.load %arg4[%c0_20, %c0_21] : memref<32x16xf32, #tpu.memory_space<vmem>>, vector<32x16xf32>
    %cst_22 = arith.constant dense<0.000000e+00> : vector<32x128xf32>
    %32 = tpu.matmul %31, %30, %cst_22 {dimension_numbers = #tpu.dot_dimension_numbers<[1], [0], [0], [1], [0, 0, 1, 1], [], []>} : vector<32x16xf32>, vector<16x128xf32>, vector<32x128xf32> -> vector<32x128xf32>
    %c0_23 = arith.constant 0 : index
    %c0_24 = arith.constant 0 : index
    %33 = vector.load %arg5[%c0_23, %c0_24] : memref<32x1xf32, #tpu.memory_space<vmem>>, vector<32x1xf32>
    %34 = vector.broadcast %33 : vector<32x1xf32> to vector<32x128xf32>
    %35 = arith.addf %32, %34 : vector<32x128xf32>
    %c0_25 = arith.constant 0 : index
    %c0_26 = arith.constant 0 : index
    %36 = memref.load %arg6[%c0_25, %c0_26] : memref<1x1xf32, #tpu.memory_space<smem>>
    %cst_27 = arith.constant 0.000000e+00 : f32
    %37 = vector.broadcast %cst_27 : f32 to vector<32x128xf32>
    %38 = arith.cmpf ogt, %35, %37 : vector<32x128xf32>
    %39 = vector.broadcast %36 : f32 to vector<32x128xf32>
    %40 = arith.mulf %35, %39 : vector<32x128xf32>
    %41 = arith.select %38, %35, %40 : vector<32x128xi1>, vector<32x128xf32>
    %c0_28 = arith.constant 0 : index
    %c0_29 = arith.constant 0 : index
    %42 = vector.load %arg7[%c0_28, %c0_29] : memref<16x32xf32, #tpu.memory_space<vmem>>, vector<16x32xf32>
    %cst_30 = arith.constant dense<0.000000e+00> : vector<16x128xf32>
    %43 = tpu.matmul %42, %41, %cst_30 {dimension_numbers = #tpu.dot_dimension_numbers<[1], [0], [0], [1], [0, 0, 1, 1], [], []>} : vector<16x32xf32>, vector<32x128xf32>, vector<16x128xf32> -> vector<16x128xf32>
    %c0_31 = arith.constant 0 : index
    %c0_32 = arith.constant 0 : index
    %44 = vector.load %arg8[%c0_31, %c0_32] : memref<16x1xf32, #tpu.memory_space<vmem>>, vector<16x1xf32>
    %45 = vector.broadcast %44 : vector<16x1xf32> to vector<16x128xf32>
    %46 = arith.addf %43, %45 : vector<16x128xf32>
    %47 = arith.addf %46, %30 : vector<16x128xf32>
    %c0_33 = arith.constant 0 : index
    %c0_34 = arith.constant 0 : index
    %c0_35 = arith.constant 0 : index
    %48 = vector.load %arg9[%c0_33, %c0_34, %c0_35] : memref<1x16x128xf32, #tpu.memory_space<vmem>>, vector<1x16x128xf32>
    %49 = vector.shape_cast %48 : vector<1x16x128xf32> to vector<16x128xf32>
    %50 = vector.shape_cast %47 : vector<16x128xf32> to vector<1x16x128xf32>
    tpu.vector_store %arg9[%c0_33, %c0_34, %c0_35], %50 {strides = array<i32>} : memref<1x16x128xf32, #tpu.memory_space<vmem>>, vector<1x16x128xf32>,
    return
  }
  func.func @transform_0(%arg0: i32) -> (i32, i32, i32) {
    %c0_i32 = arith.constant 0 : i32
    %c0_i32_0 = arith.constant 0 : i32
    %c0_i32_1 = arith.constant 0 : i32
    return %arg0, %c0_i32, %c0_i32_0 : i32, i32, i32
  }
  func.func @transform_1(%arg0: i32) -> (i32, i32) {
    %c0_i32 = arith.constant 0 : i32
    %c0_i32_0 = arith.constant 0 : i32
    %c0_i32_1 = arith.constant 0 : i32
    return %c0_i32, %c0_i32_0 : i32, i32
  }
  func.func @transform_2(%arg0: i32) -> (i32, i32) {
    %c0_i32 = arith.constant 0 : i32
    %c0_i32_0 = arith.constant 0 : i32
    %c0_i32_1 = arith.constant 0 : i32
    return %c0_i32, %c0_i32_0 : i32, i32
  }
  func.func @transform_3(%arg0: i32) -> (i32, i32) {
    %c0_i32 = arith.constant 0 : i32
    %c0_i32_0 = arith.constant 0 : i32
    %c0_i32_1 = arith.constant 0 : i32
    return %c0_i32, %c0_i32_0 : i32, i32
  }
  func.func @transform_4(%arg0: i32) -> (i32, i32) {
    %c0_i32 = arith.constant 0 : i32
    %c0_i32_0 = arith.constant 0 : i32
    %c0_i32_1 = arith.constant 0 : i32
    return %c0_i32, %c0_i32_0 : i32, i32
  }
  func.func @transform_5(%arg0: i32) -> (i32, i32) {
    %c0_i32 = arith.constant 0 : i32
    %c0_i32_0 = arith.constant 0 : i32
    %c0_i32_1 = arith.constant 0 : i32
    return %c0_i32, %c0_i32_0 : i32, i32
  }
  func.func @transform_6(%arg0: i32) -> (i32, i32) {
    %c0_i32 = arith.constant 0 : i32
    %c0_i32_0 = arith.constant 0 : i32
    %c0_i32_1 = arith.constant 0 : i32
    return %c0_i32, %c0_i32_0 : i32, i32
  }
  func.func @transform_7(%arg0: i32) -> (i32, i32) {
    %c0_i32 = arith.constant 0 : i32
    %c0_i32_0 = arith.constant 0 : i32
    %c0_i32_1 = arith.constant 0 : i32
    return %c0_i32, %c0_i32_0 : i32, i32
  }
  func.func @transform_8(%arg0: i32) -> (i32, i32, i32) {
    %c0_i32 = arith.constant 0 : i32
    %c0_i32_0 = arith.constant 0 : i32
    %c0_i32_1 = arith.constant 0 : i32
    return %arg0, %c0_i32, %c0_i32_0 : i32, i32, i32
  }
}

</mosaic_0001>

<llo_original>
// kernel: tpu_custom_call.1
$region0: #{tpu_custom_call.1}
  #allocation0 [shape = 'u32[]', space=smem, size = 0x4, offset = 0x4, fixed_abs, tag = 'smem constant byte address 0x4 - core index']
  #allocation1 [shape = 'u32[144,128]{1,0:T(1,128)}', space=vmem, size = 0x12000, scoped, tag = 'internal scratch']
  #allocation2 [shape = 'f32[16,134]{1,0:T(8,128)}', space=vmem, size = 0x4000, scoped, tag = 'scratch operand']
  #allocation3 [shape = 'f32[1,1]{1,0:T(1,128)S(6)}', space=smem, size = 0x200, scoped, tag = 'scoped memory for tpu_custom_call.1']
  %s0 = inlined_call_operand.vmem [shape: f32[2,16,128], index: 0, kind: input, shape index: {}]
  %s1 = inlined_call_operand.vmem [shape: f32[16,4], index: 1, kind: input, shape index: {}]
  %s2 = inlined_call_operand.vmem [shape: f32[16,1], index: 2, kind: input, shape index: {}]
  %s3 = inlined_call_operand.vmem [shape: f32[32,16], index: 3, kind: input, shape index: {}]
  %s4 = inlined_call_operand.vmem [shape: f32[32,1], index: 4, kind: input, shape index: {}]
  %s5 = inlined_call_operand.<no memory space> [shape: f32[1,1], index: 5, kind: input, shape index: {}]
  %s6 = inlined_call_operand.vmem [shape: f32[16,32], index: 6, kind: input, shape index: {}]
  %s7 = inlined_call_operand.vmem [shape: f32[16,1], index: 7, kind: input, shape index: {}]
  %s8 = inlined_call_operand.hbm [shape: f32[2,16,128], index: 8, kind: output, shape index: {}]
  %s9 = sld [smem:[#allocation0]]
  $region65: #{tpu_custom_call.1} parent=0
    _
  %s11 = ssub.s32 1, %s9
  %s12 = scalar_select 0, %s11, %s9
  %13 = sst [smem:[#allocation3]] %s5
  $region1: #{tpu_custom_call.1} parent=0
    #allocation4 [shape = 'u8[16384]{0}', space=vmem, size = 0x4000, scoped, tag = 'output window, operand 0']
    #allocation5 [shape = 's32[2]{0}', space=sflag, size = 0x8, scoped, tag = 'scoped memory for tpu_custom_call.1']
    %14 = vsyncpa [#allocation5], 0
    %s15 = scalar_lea.sflag [#allocation5], 1
    %16 = vsyncpa %s15, 0
    loop: start=0, step=1, limit=4
    $region2: #{tpu_custom_call.1} parent=1 // loop_pre_header
      _
    $region3: #{tpu_custom_call.1} parent=1 // loop_header
      %s18 = sphi 0, %s22
      %p19 = scmp.ge.s32.totalorder %s18, 4
      %s28 = sphi 0, %s30
      %s31 = sphi 0, %s28
      %s32 = sphi 0, %s31
      %s48 = sphi 0, %s32
      %s52 = sphi 0, %s52
      %s54 = sphi 0, %s52
      %s55 = sphi 0, %s54
      %s69 = sphi 0, %s55
      %s73 = sphi 0, %s73
      %s75 = sphi 0, %s73
      %s76 = sphi 0, %s75
      %s90 = sphi 0, %s76
      %s94 = sphi 0, %s94
      %s96 = sphi 0, %s94
      %s97 = sphi 0, %s96
      %s111 = sphi 0, %s97
      %s115 = sphi 0, %s115
      %s117 = sphi 0, %s115
      %s118 = sphi 0, %s117
      %s132 = sphi 0, %s118
      %s136 = sphi 0, %s136
      %s138 = sphi 0, %s136
      %s139 = sphi 0, %s138
      %s153 = sphi 0, %s139
      %s157 = sphi 0, %s157
      %s159 = sphi 0, %s157
      %s160 = sphi 0, %s159
      %s174 = sphi 0, %s160
      %s178 = sphi 0, %s178
      %s180 = sphi 0, %s178
      %s181 = sphi 0, %s180
      %s195 = sphi 0, %s181
      %s201 = sphi 0, %s203
      %s204 = sphi 0, %s201
      %s205 = sphi 0, %s204
      %s221 = sphi 0, %s205
    $region4: #{tpu_custom_call.1} parent=1 // loop_header_branch
      %21 = sbr.rel (%p19) target = $region8
    $region5: #{tpu_custom_call.1} parent=1 // loop_body
      %s23 = ssub.s32 %s18, 1
      %s24 = ssub.s32 %s18, 2
      %s25 = sadd.s32 %s18, 1
      %s26 = ssub.s32 %s18, %s25
      %p27 = scmp.eq.s32.totalorder %s26, 0
      %s29 = sadd.s32 %s28, 1
      %s30 = scalar_select %p27, %s28, %s29
      %p33 = pneg %p27
      %p34 = scmp.eq.s32.totalorder %s18, 1
      %p35 = por %p33, %p34
      %p36 = scmp.ne.s32.totalorder %s28, %s31
      %p37 = scmp.eq.s32.totalorder %s18, 0
      %p38 = por %p36, %p37
      %p39 = scmp.ne.s32.totalorder %s28, %s31
      %p40 = scmp.eq.s32.totalorder %s23, 1
      %p41 = por %p39, %p40
      %p42 = scmp.ne.s32.totalorder %s31, %s32
      %p43 = scmp.eq.s32.totalorder %s23, 0
      %p44 = por %p42, %p43
      %p45 = scmp.ne.s32.totalorder %s31, %s32
      %p46 = scmp.eq.s32.totalorder %s24, 1
      %p47 = por %p45, %p46
      %p49 = scmp.ne.s32.totalorder %s32, %s48
      %p50 = scmp.eq.s32.totalorder %s24, 0
      %p51 = por %p49, %p50
      %s53 = sadd.s32 %s52, 1
      %p56 = scmp.eq.s32.totalorder %s18, 1
      %p57 = scmp.ne.s32.totalorder %s52, %s54
      %p58 = scmp.eq.s32.totalorder %s18, 0
      %p59 = por %p57, %p58
      %p60 = scmp.ne.s32.totalorder %s52, %s54
      %p61 = scmp.eq.s32.totalorder %s23, 1
      %p62 = por %p60, %p61
      %p63 = scmp.ne.s32.totalorder %s54, %s55
      %p64 = scmp.eq.s32.totalorder %s23, 0
      %p65 = por %p63, %p64
      %p66 = scmp.ne.s32.totalorder %s54, %s55
      %p67 = scmp.eq.s32.totalorder %s24, 1
      %p68 = por %p66, %p67
      %p70 = scmp.ne.s32.totalorder %s55, %s69
      %p71 = scmp.eq.s32.totalorder %s24, 0
      %p72 = por %p70, %p71
      %s74 = sadd.s32 %s73, 1
      %p77 = scmp.eq.s32.totalorder %s18, 1
      %p78 = scmp.ne.s32.totalorder %s73, %s75
      %p79 = scmp.eq.s32.totalorder %s18, 0
      %p80 = por %p78, %p79
      %p81 = scmp.ne.s32.totalorder %s73, %s75
      %p82 = scmp.eq.s32.totalorder %s23, 1
      %p83 = por %p81, %p82
      %p84 = scmp.ne.s32.totalorder %s75, %s76
      %p85 = scmp.eq.s32.totalorder %s23, 0
      %p86 = por %p84, %p85
      %p87 = scmp.ne.s32.totalorder %s75, %s76
      %p88 = scmp.eq.s32.totalorder %s24, 1
      %p89 = por %p87, %p88
      %p91 = scmp.ne.s32.totalorder %s76, %s90
      %p92 = scmp.eq.s32.totalorder %s24, 0
      %p93 = por %p91, %p92
      %s95 = sadd.s32 %s94, 1
      %p98 = scmp.eq.s32.totalorder %s18, 1
      %p99 = scmp.ne.s32.totalorder %s94, %s96
      %p100 = scmp.eq.s32.totalorder %s18, 0
      %p101 = por %p99, %p100
      %p102 = scmp.ne.s32.totalorder %s94, %s96
      %p103 = scmp.eq.s32.totalorder %s23, 1
      %p104 = por %p102, %p103
      %p105 = scmp.ne.s32.totalorder %s96, %s97
      %p106 = scmp.eq.s32.totalorder %s23, 0
      %p107 = por %p105, %p106
      %p108 = scmp.ne.s32.totalorder %s96, %s97
      %p109 = scmp.eq.s32.totalorder %s24, 1
      %p110 = por %p108, %p109
      %p112 = scmp.ne.s32.totalorder %s97, %s111
      %p113 = scmp.eq.s32.totalorder %s24, 0
      %p114 = por %p112, %p113
      %s116 = sadd.s32 %s115, 1
      %p119 = scmp.eq.s32.totalorder %s18, 1
      %p120 = scmp.ne.s32.totalorder %s115, %s117
      %p121 = scmp.eq.s32.totalorder %s18, 0
      %p122 = por %p120, %p121
      %p123 = scmp.ne.s32.totalorder %s115, %s117
      %p124 = scmp.eq.s32.totalorder %s23, 1
      %p125 = por %p123, %p124
      %p126 = scmp.ne.s32.totalorder %s117, %s118
      %p127 = scmp.eq.s32.totalorder %s23, 0
      %p128 = por %p126, %p127
      %p129 = scmp.ne.s32.totalorder %s117, %s118
      %p130 = scmp.eq.s32.totalorder %s24, 1
      %p131 = por %p129, %p130
      %p133 = scmp.ne.s32.totalorder %s118, %s132
      %p134 = scmp.eq.s32.totalorder %s24, 0
      %p135 = por %p133, %p134
      %s137 = sadd.s32 %s136, 1
      %p140 = scmp.eq.s32.totalorder %s18, 1
      %p141 = scmp.ne.s32.totalorder %s136, %s138
      %p142 = scmp.eq.s32.totalorder %s18, 0
      %p143 = por %p141, %p142
      %p144 = scmp.ne.s32.totalorder %s136, %s138
      %p145 = scmp.eq.s32.totalorder %s23, 1
      %p146 = por %p144, %p145
      %p147 = scmp.ne.s32.totalorder %s138, %s139
      %p148 = scmp.eq.s32.totalorder %s23, 0
      %p149 = por %p147, %p148
      %p150 = scmp.ne.s32.totalorder %s138, %s139
      %p151 = scmp.eq.s32.totalorder %s24, 1
      %p152 = por %p150, %p151
      %p154 = scmp.ne.s32.totalorder %s139, %s153
      %p155 = scmp.eq.s32.totalorder %s24, 0
      %p156 = por %p154, %p155
      %s158 = sadd.s32 %s157, 1
      %p161 = scmp.eq.s32.totalorder %s18, 1
      %p162 = scmp.ne.s32.totalorder %s157, %s159
      %p163 = scmp.eq.s32.totalorder %s18, 0
      %p164 = por %p162, %p163
      %p165 = scmp.ne.s32.totalorder %s157, %s159
      %p166 = scmp.eq.s32.totalorder %s23, 1
      %p167 = por %p165, %p166
      %p168 = scmp.ne.s32.totalorder %s159, %s160
      %p169 = scmp.eq.s32.totalorder %s23, 0
      %p170 = por %p168, %p169
      %p171 = scmp.ne.s32.totalorder %s159, %s160
      %p172 = scmp.eq.s32.totalorder %s24, 1
      %p173 = por %p171, %p172
      %p175 = scmp.ne.s32.totalorder %s160, %s174
      %p176 = scmp.eq.s32.totalorder %s24, 0
      %p177 = por %p175, %p176
      %s179 = sadd.s32 %s178, 1
      %p182 = scmp.eq.s32.totalorder %s18, 1
      %p183 = scmp.ne.s32.totalorder %s178, %s180
      %p184 = scmp.eq.s32.totalorder %s18, 0
      %p185 = por %p183, %p184
      %p186 = scmp.ne.s32.totalorder %s178, %s180
      %p187 = scmp.eq.s32.totalorder %s23, 1
      %p188 = por %p186, %p187
      %p189 = scmp.ne.s32.totalorder %s180, %s181
      %p190 = scmp.eq.s32.totalorder %s23, 0
      %p191 = por %p189, %p190
      %p192 = scmp.ne.s32.totalorder %s180, %s181
      %p193 = scmp.eq.s32.totalorder %s24, 1
      %p194 = por %p192, %p193
      %p196 = scmp.ne.s32.totalorder %s181, %s195
      %p197 = scmp.eq.s32.totalorder %s24, 0
      %p198 = por %p196, %p197
      %s199 = ssub.s32 %s18, %s25
      %p200 = scmp.eq.s32.totalorder %s199, 0
      %s202 = sadd.s32 %s201, 1
      %s203 = scalar_select %p200, %s201, %s202
      %p206 = pneg %p200
      %p207 = scmp.eq.s32.totalorder %s18, 1
      %p208 = por %p206, %p207
      %p209 = scmp.ne.s32.totalorder %s201, %s204
      %p210 = scmp.eq.s32.totalorder %s18, 0
      %p211 = por %p209, %p210
      %p212 = scmp.ne.s32.totalorder %s201, %s204
      %p213 = scmp.eq.s32.totalorder %s23, 1
      %p214 = por %p212, %p213
      %p215 = scmp.ne.s32.totalorder %s204, %s205
      %p216 = scmp.eq.s32.totalorder %s23, 0
      %p217 = por %p215, %p216
      %p218 = scmp.ne.s32.totalorder %s204, %s205
      %p219 = scmp.eq.s32.totalorder %s24, 1
      %p220 = por %p218, %p219
      %p222 = scmp.ne.s32.totalorder %s205, %s221
      %p223 = scmp.eq.s32.totalorder %s24, 0
      %p224 = por %p222, %p223
      %p225 = scmp.le.s32.totalorder 1, %s18
      %p226 = scmp.lt.s32.totalorder %s18, 3
      %p227 = pnand %p225, %p226
      %p228 = pneg %p227
      // Predicated region
      $region9: #{tpu_custom_call.1} parent=5 // pred_check
        _
      $region10: #{tpu_custom_call.1} parent=5 // pred_check_branch
        %230 = sbr.rel (%p227) target = $region12
      $region11: #{tpu_custom_call.1} parent=5 // pred_region
        %s231 = ssub.s32 %s18, 1
        // Predicated region
        $region13: #{tpu_custom_call.1} parent=11 // pred_check
          %p232 = pneg %p65
        $region14: #{tpu_custom_call.1} parent=11 // pred_check_branch
          %234 = sbr.rel (%p232) target = $region16
        $region15: #{tpu_custom_call.1} parent=11 // pred_region
          _
        $region16: #{tpu_custom_call.1} parent=11 // pred_fallthru
          _
        // Predicated region
        $region17: #{tpu_custom_call.1} parent=11 // pred_check
          %p235 = pneg %p86
        $region18: #{tpu_custom_call.1} parent=11 // pred_check_branch
          %237 = sbr.rel (%p235) target = $region20
        $region19: #{tpu_custom_call.1} parent=11 // pred_region
          _
        $region20: #{tpu_custom_call.1} parent=11 // pred_fallthru
          _
        // Predicated region
        $region21: #{tpu_custom_call.1} parent=11 // pred_check
          %p238 = pneg %p107
        $region22: #{tpu_custom_call.1} parent=11 // pred_check_branch
          %240 = sbr.rel (%p238) target = $region24
        $region23: #{tpu_custom_call.1} parent=11 // pred_region
          _
        $region24: #{tpu_custom_call.1} parent=11 // pred_fallthru
          _
        // Predicated region
        $region25: #{tpu_custom_call.1} parent=11 // pred_check
          %p241 = pneg %p128
        $region26: #{tpu_custom_call.1} parent=11 // pred_check_branch
          %243 = sbr.rel (%p241) target = $region28
        $region27: #{tpu_custom_call.1} parent=11 // pred_region
          _
        $region28: #{tpu_custom_call.1} parent=11 // pred_fallthru
          _
        // Predicated region
        $region29: #{tpu_custom_call.1} parent=11 // pred_check
          %p244 = pneg %p149
        $region30: #{tpu_custom_call.1} parent=11 // pred_check_branch
          %246 = sbr.rel (%p244) target = $region32
        $region31: #{tpu_custom_call.1} parent=11 // pred_region
          _
        $region32: #{tpu_custom_call.1} parent=11 // pred_fallthru
          _
        // Predicated region
        $region33: #{tpu_custom_call.1} parent=11 // pred_check
          %p247 = pneg %p170
        $region34: #{tpu_custom_call.1} parent=11 // pred_check_branch
          %249 = sbr.rel (%p247) target = $region36
        $region35: #{tpu_custom_call.1} parent=11 // pred_region
          _
        $region36: #{tpu_custom_call.1} parent=11 // pred_fallthru
          _
        // Predicated region
        $region37: #{tpu_custom_call.1} parent=11 // pred_check
          %p250 = pneg %p191
        $region38: #{tpu_custom_call.1} parent=11 // pred_check_branch
          %252 = sbr.rel (%p250) target = $region40
        $region39: #{tpu_custom_call.1} parent=11 // pred_region
          _
        $region40: #{tpu_custom_call.1} parent=11 // pred_fallthru
          _
      $region12: #{tpu_custom_call.1} parent=5 // pred_fallthru
        _
      %p253 = scmp.lt.s32.totalorder %s18, 2
      // Predicated region
      $region41: #{tpu_custom_call.1} parent=5 // pred_check
        %p254 = pneg %p253
      $region42: #{tpu_custom_call.1} parent=5 // pred_check_branch
        %256 = sbr.rel (%p254) target = $region44
      $region43: #{tpu_custom_call.1} parent=5 // pred_region
        // Predicated region
        $region45: #{tpu_custom_call.1} parent=43 // pred_check
          %p257 = pneg %p38
        $region46: #{tpu_custom_call.1} parent=43 // pred_check_branch
          %259 = sbr.rel (%p257) target = $region48
        $region47: #{tpu_custom_call.1} parent=43 // pred_region
          %p260 = scmp.lt.s32.totalorder %s18, 1
          %s261 = scalar_select %p260, %s18, 1
          %s262 = smul.addr %s261, 2
          %s263 = smul.addr %s262, 8
          %s264 = scalar_lea.vmem %s0, %s263
        $region48: #{tpu_custom_call.1} parent=43 // pred_fallthru
          _
      $region44: #{tpu_custom_call.1} parent=5 // pred_fallthru
        _
      %p265 = scmp.le.s32.totalorder 1, %s18
      %p266 = scmp.lt.s32.totalorder %s18, 3
      %p267 = pnand %p265, %p266
      %p268 = pneg %p267
      // Predicated region
      $region49: #{tpu_custom_call.1} parent=5 // pred_check
        _
      $region50: #{tpu_custom_call.1} parent=5 // pred_check_branch
        %270 = sbr.rel (%p267) target = $region52
      $region51: #{tpu_custom_call.1} parent=5 // pred_region
        %s271 = ssub.s32 %s18, 1
        %p272 = scmp.lt.s32.totalorder %s23, 1
        %s273 = scalar_select %p272, %s23, 1
        %s274 = smul.addr %s273, 2
        %s275 = smul.addr %s274, 8
        %s276 = scalar_lea.vmem %s0, %s275
        %p277 = pneg %p44
        %p278 = pneg %p41
        %p279 = pneg %p65
        %p280 = pneg %p62
        %p281 = pneg %p86
        %p282 = pneg %p83
        %p283 = pneg %p107
        %p284 = pneg %p104
        %p285 = pneg %p128
        %p286 = pneg %p125
        %p287 = pneg %p149
        %p288 = pneg %p146
        %p289 = pneg %p170
        %p290 = pneg %p167
        %p291 = pneg %p191
        %p292 = pneg %p188
        %p293 = pneg %p217
        %p294 = pneg %p214
        %s295 = sand.u32 %s204, 1
        %s296 = scalar_lea.sflag [#allocation5], %s295
        %s297 = sand.u32 %s204, 1
        %s298 = smul.addr %s297, 16
        %s299 = scalar_lea.vmem [#allocation4], %s298
        %p300 = scmp.lt.s32.totalorder %s23, 1
        %s301 = scalar_select %p300, %s23, 1
        %s302 = smul.addr %s301, 2
        %s303 = smul.addr %s302, 8
        %s304 = scalar_lea.vmem %s0, %s303
        %v305 = vld [vmem:[%s304] sm:$0xff]
        %v306 = vld [vmem:[%s304 + $0x8] sm:$0xff]
        %vm307 = vcmask 31744
        %308 = vst.msk [vmem:[#allocation2] sm:$0xff] %vm307, 0.0
        %309 = vst.msk [vmem:[#allocation2 + $0x10] sm:$0xff] %vm307, 0.0
        %vm310 = vcmask 48160
        %311 = vst.msk [vmem:[#allocation2 + $0x8] sm:$0xff] %vm310, 0.0
        %312 = vst.msk [vmem:[#allocation2 + $0x18] sm:$0xff] %vm310, 0.0
        %315 = vrot.lane.b32.xlu0 %v305, 4
        %v316 = vpop.permute.xlu0 %315
        %317 = vrot.lane.b32.xlu0 %v306, 4
        %v318 = vpop.permute.xlu0 %317
        %vm321 = vcmask 1047584
        %322 = vst.msk [vmem:[#allocation2] sm:$0xff] %vm321, %v316
        %323 = vst.msk [vmem:[#allocation2 + $0x8] sm:$0xff] %vm307, %v316
        %324 = vst.msk [vmem:[#allocation2 + $0x10] sm:$0xff] %vm321, %v318
        %325 = vst.msk [vmem:[#allocation2 + $0x18] sm:$0xff] %vm307, %v318
        %v326 = vld [vmem:[#allocation2] sm:$0xff]
        %v327 = vld [vmem:[#allocation2 + $0x10] sm:$0xff]
        %v328 = vld [vmem:[%s1] sm:$0xff]
        %v329 = vld [vmem:[%s1 + $0x8] sm:$0xff]
        %331 = vset.pattern.permute.xlu0 0
        %332 = vperm.xlu0 %331, %v328
        %v333 = vpop.permute.xlu0 %332
        %336 = vset.pattern.permute.xlu0 0
        %337 = vperm.xlu0 %336, %v329
        %v338 = vpop.permute.xlu0 %337
        %v340 = vmul.f32 %v326, %v333
        %v341 = vmul.f32 %v327, %v338
        %v342 = vadd.f32 %v340, 0.0
        %v343 = vadd.f32 %v341, 0.0
        %v344 = vld [vmem:[#allocation2] sm:$0xff]
        %v345 = vld [vmem:[#allocation2 + $0x8] sm:$0xff]
        %v346 = vld [vmem:[#allocation2 + $0x10] sm:$0xff]
        %v347 = vld [vmem:[#allocation2 + $0x18] sm:$0xff]
        %348 = vset.pattern.permute.xlu0 1
        %349 = vperm.xlu0 %348, %v328
        %v350 = vpop.permute.xlu0 %349
        %352 = vset.pattern.permute.xlu0 1
        %353 = vperm.xlu0 %352, %v329
        %v354 = vpop.permute.xlu0 %353
        %v356 = vmul.f32 %v344, %v350
        %v357 = vmul.f32 %v345, %v350
        %v358 = vmul.f32 %v346, %v354
        %v359 = vmul.f32 %v347, %v354
        %364 = vrot.lane.b32.xlu0 %v356, 126
        %v365 = vpop.permute.xlu0 %364
        %366 = vrot.lane.b32.xlu0 %v357, 126
        %v367 = vpop.permute.xlu0 %366
        %368 = vrot.lane.b32.xlu0 %v358, 126
        %v369 = vpop.permute.xlu0 %368
        %370 = vrot.lane.b32.xlu0 %v359, 126
        %v371 = vpop.permute.xlu0 %370
        %vm372 = vcmask 1031168
        %v373 = vsel %vm372, %v365, %v367
        %v374 = vsel %vm372, %v369, %v371
        %v377 = vadd.f32 %v342, %v373
        %v378 = vadd.f32 %v343, %v374
        %379 = vset.pattern.permute.xlu0 2
        %380 = vperm.xlu0 %379, %v328
        %v381 = vpop.permute.xlu0 %380
        %383 = vset.pattern.permute.xlu0 2
        %384 = vperm.xlu0 %383, %v329
        %v385 = vpop.permute.xlu0 %384
        %v387 = vmul.f32 %v305, %v381
        %v388 = vmul.f32 %v306, %v385
        %v389 = vadd.f32 %v377, %v387
        %v390 = vadd.f32 %v378, %v388
        %391 = vset.pattern.permute.xlu0 3
        %392 = vperm.xlu0 %391, %v328
        %v393 = vpop.permute.xlu0 %392
        %395 = vset.pattern.permute.xlu0 3
        %396 = vperm.xlu0 %395, %v329
        %v397 = vpop.permute.xlu0 %396
        %v399 = vmul.f32 %v344, %v393
        %v400 = vmul.f32 %v345, %v393
        %v401 = vmul.f32 %v346, %v397
        %v402 = vmul.f32 %v347, %v397
        %407 = vrot.lane.b32.xlu0 %v399, 122
        %v408 = vpop.permute.xlu0 %407
        %409 = vrot.lane.b32.xlu0 %v400, 122
        %v410 = vpop.permute.xlu0 %409
        %411 = vrot.lane.b32.xlu0 %v401, 122
        %v412 = vpop.permute.xlu0 %411
        %413 = vrot.lane.b32.xlu0 %v402, 122
        %v414 = vpop.permute.xlu0 %413
        %vm415 = vcmask 998400
        %v416 = vsel %vm415, %v408, %v410
        %v417 = vsel %vm415, %v412, %v414
        %v420 = vadd.f32 %v389, %v416
        %v421 = vadd.f32 %v390, %v417
        %v422 = vld [vmem:[%s2] sm:$0xff]
        %v423 = vld [vmem:[%s2 + $0x8] sm:$0xff]
        %425 = vset.pattern.permute.xlu0 0
        %426 = vperm.xlu0 %425, %v422
        %v427 = vpop.permute.xlu0 %426
        %430 = vset.pattern.permute.xlu0 0
        %431 = vperm.xlu0 %430, %v423
        %v432 = vpop.permute.xlu0 %431
        %v434 = vadd.f32 %v420, %v427
        %v435 = vadd.f32 %v421, %v432
        %v436 = vadd.f32 %v434, %v305
        %v437 = vadd.f32 %v435, %v306
        %v438 = vld [vmem:[%s3] sm:$0xff]
        %v439 = vld [vmem:[%s3 + $0x8] sm:$0xff]
        %v440 = vld [vmem:[%s3 + $0x10] sm:$0xff]
        %v441 = vld [vmem:[%s3 + $0x18] sm:$0xff]
        %v442 = vld [vmem:[%s4] sm:$0xff]
        %v443 = vld [vmem:[%s4 + $0x8] sm:$0xff]
        %v444 = vld [vmem:[%s4 + $0x10] sm:$0xff]
        %v445 = vld [vmem:[%s4 + $0x18] sm:$0xff]
        %447 = vset.pattern.permute.xlu0 0
        %448 = vperm.xlu0 %447, %v442
        %v449 = vpop.permute.xlu0 %448
        %452 = vset.pattern.permute.xlu0 0
        %453 = vperm.xlu0 %452, %v443
        %v454 = vpop.permute.xlu0 %453
        %457 = vset.pattern.permute.xlu0 0
        %458 = vperm.xlu0 %457, %v444
        %v459 = vpop.permute.xlu0 %458
        %462 = vset.pattern.permute.xlu0 0
        %463 = vperm.xlu0 %462, %v445
        %v464 = vpop.permute.xlu0 %463
        %vm466 = vcmask 130048
        %v468 = vsel %vm466, %v438, 0
        %v471 = vsel %vm466, %v439, 0
        %v474 = vsel %vm466, %v440, 0
        %v477 = vsel %vm466, %v441, 0
        %479 = vmatprep.subr.mxu0 0.0
        %480 = vmatpush1.msra.mxu0 %v436
        %481 = vmatprep.subr.mxu0 0.0
        %482 = vmatpush1.msra.mxu0 %v437
        %483 = vmatprep.subr.mxu0 0.0
        %484 = vmatpush1.msra.mxu0 0.0
        %485 = vmatprep.subr.mxu0 0.0
        %486 = vmatpush1.msra.mxu0 0.0
        %487 = vmatprep.subr.mxu0 0.0
        %488 = vmatpush1.msra.mxu0 0.0
        %489 = vmatprep.subr.mxu0 0.0
        %490 = vmatpush1.msra.mxu0 0.0
        %491 = vmatprep.subr.mxu0 0.0
        %492 = vmatpush1.msra.mxu0 0.0
        %493 = vmatprep.subr.mxu0 0.0
        %494 = vmatpush1.msra.mxu0 0.0
        %495 = vmatprep.subr.mxu0 0.0
        %496 = vmatpush1.msra.mxu0 0.0
        %497 = vmatprep.subr.mxu0 0.0
        %498 = vmatpush1.msra.mxu0 0.0
        %499 = vmatprep.subr.mxu0 0.0
        %500 = vmatpush1.msra.mxu0 0.0
        %501 = vmatprep.subr.mxu0 0.0
        %502 = vmatpush1.msra.mxu0 0.0
        %503 = vmatprep.subr.mxu0 0.0
        %504 = vmatpush1.msra.mxu0 0.0
        %505 = vmatprep.subr.mxu0 0.0
        %506 = vmatpush1.msra.mxu0 0.0
        %507 = vmatprep.subr.mxu0 0.0
        %508 = vmatpush1.msra.mxu0 0.0
        %509 = vmatprep.subr.mxu0 0.0
        %510 = vmatpush1.msra.mxu0 0.0
        %511 = vmatprep.subr.mxu0 0.0
        %512 = vmatpush1.msra.mxu0 0.0
        %513 = vmatprep.subr.mxu0 0.0
        %514 = vmatpush1.msra.mxu0 0.0
        %515 = vmatprep.subr.mxu0 0.0
        %516 = vmatpush1.msra.mxu0 0.0
        %517 = vmatprep.subr.mxu0 0.0
        %518 = vmatpush1.msra.mxu0 0.0
        %519 = vmatprep.subr.mxu0 0.0
        %520 = vmatpush1.msra.mxu0 0.0
        %521 = vmatprep.subr.mxu0 0.0
        %522 = vmatpush1.msra.mxu0 0.0
        %523 = vmatprep.subr.mxu0 0.0
        %524 = vmatpush1.msra.mxu0 0.0
        %525 = vmatprep.subr.mxu0 0.0
        %526 = vmatpush1.msra.mxu0 0.0
        %527 = vmatprep.subr.mxu0 0.0
        %528 = vmatpush1.msra.mxu0 0.0
        %529 = vmatprep.subr.mxu0 0.0
        %530 = vmatpush1.msra.mxu0 0.0
        %531 = vmatprep.subr.mxu0 0.0
        %532 = vmatpush1.msra.mxu0 0.0
        %533 = vmatprep.subr.mxu0 0.0
        %534 = vmatpush1.msra.mxu0 0.0
        %535 = vmatprep.subr.mxu0 0.0
        %536 = vmatpush1.msra.mxu0 0.0
        %537 = vmatprep.subr.mxu0 0.0
        %538 = vmatpush1.msra.mxu0 0.0
        %539 = vmatprep.subr.mxu0 0.0
        %540 = vmatpush1.msra.mxu0 0.0
        %541 = vmatprep.subr.mxu0 0.0
        %542 = vmatpush1.msra.mxu0 0.0
        %543 = vmatprep.mubr.f32.mxu0 0.0
        %544 = vmatmul.mubr.f32.gmra.mrb[0].mxu0 %v468
        %v545 = vpop.f32.mrb[0].mxu0
        %v546 = vadd.f32 %v449, %v545
        %v547 = vpop.f32.mrb[0].mxu0
        %548 = vmatprep.mubr.f32.mxu0 0.0
        %549 = vmatmul.mubr.f32.gmra.mrb[0].mxu0 %v471
        %v550 = vpop.f32.mrb[0].mxu0
        %v551 = vadd.f32 %v454, %v550
        %v552 = vpop.f32.mrb[0].mxu0
        %553 = vmatprep.mubr.f32.mxu0 0.0
        %554 = vmatmul.mubr.f32.gmra.mrb[0].mxu0 %v474
        %v555 = vpop.f32.mrb[0].mxu0
        %v556 = vadd.f32 %v459, %v555
        %v557 = vpop.f32.mrb[0].mxu0
        %558 = vmatprep.mubr.f32.mxu0 0.0
        %559 = vmatmul.mubr.f32.gmra.mrb[0].mxu0 %v477
        %v560 = vpop.f32.mrb[0].mxu0
        %v561 = vadd.f32 %v464, %v560
        %v562 = vpop.f32.mrb[0].mxu0
        %563 = vdwg.mxu0
        %s564 = sld [smem:[#allocation3]]
        %vm565 = vcmp.gt.f32.partialorder %v546, 0.0
        %vm566 = vcmp.gt.f32.partialorder %v551, 0.0
        %vm567 = vcmp.gt.f32.partialorder %v556, 0.0
        %vm568 = vcmp.gt.f32.partialorder %v561, 0.0
        %v569 = vstv %s564
        %v570 = vmul.f32 %v546, %v569
        %v571 = vmul.f32 %v551, %v569
        %v572 = vmul.f32 %v556, %v569
        %v573 = vmul.f32 %v561, %v569
        %v574 = vsel %vm565, %v546, %v570
        %v575 = vsel %vm566, %v551, %v571
        %v576 = vsel %vm567, %v556, %v572
        %v577 = vsel %vm568, %v561, %v573
        %v578 = vld [vmem:[%s6] sm:$0xff]
        %v579 = vld [vmem:[%s6 + $0x8] sm:$0xff]
        %v580 = vld [vmem:[%s7] sm:$0xff]
        %v581 = vld [vmem:[%s7 + $0x8] sm:$0xff]
        %583 = vset.pattern.permute.xlu0 0
        %584 = vperm.xlu0 %583, %v580
        %v585 = vpop.permute.xlu0 %584
        %588 = vset.pattern.permute.xlu0 0
        %589 = vperm.xlu0 %588, %v581
        %v590 = vpop.permute.xlu0 %589
        %vm592 = vcmask 261120
        %v594 = vsel %vm592, %v578, 0
        %v597 = vsel %vm592, %v579, 0
        %599 = vmatprep.subr.mxu0 0.0
        %600 = vmatpush1.msra.mxu0 %v574
        %601 = vmatprep.subr.mxu0 0.0
        %602 = vmatpush1.msra.mxu0 %v575
        %603 = vmatprep.subr.mxu0 0.0
        %604 = vmatpush1.msra.mxu0 %v576
        %605 = vmatprep.subr.mxu0 0.0
        %606 = vmatpush1.msra.mxu0 %v577
        %607 = vmatprep.subr.mxu0 0.0
        %608 = vmatpush1.msra.mxu0 0.0
        %609 = vmatprep.subr.mxu0 0.0
        %610 = vmatpush1.msra.mxu0 0.0
        %611 = vmatprep.subr.mxu0 0.0
        %612 = vmatpush1.msra.mxu0 0.0
        %613 = vmatprep.subr.mxu0 0.0
        %614 = vmatpush1.msra.mxu0 0.0
        %615 = vmatprep.subr.mxu0 0.0
        %616 = vmatpush1.msra.mxu0 0.0
        %617 = vmatprep.subr.mxu0 0.0
        %618 = vmatpush1.msra.mxu0 0.0
        %619 = vmatprep.subr.mxu0 0.0
        %620 = vmatpush1.msra.mxu0 0.0
        %621 = vmatprep.subr.mxu0 0.0
        %622 = vmatpush1.msra.mxu0 0.0
        %623 = vmatprep.subr.mxu0 0.0
        %624 = vmatpush1.msra.mxu0 0.0
        %625 = vmatprep.subr.mxu0 0.0
        %626 = vmatpush1.msra.mxu0 0.0
        %627 = vmatprep.subr.mxu0 0.0
        %628 = vmatpush1.msra.mxu0 0.0
        %629 = vmatprep.subr.mxu0 0.0
        %630 = vmatpush1.msra.mxu0 0.0
        %631 = vmatprep.subr.mxu0 0.0
        %632 = vmatpush1.msra.mxu0 0.0
        %633 = vmatprep.subr.mxu0 0.0
        %634 = vmatpush1.msra.mxu0 0.0
        %635 = vmatprep.subr.mxu0 0.0
        %636 = vmatpush1.msra.mxu0 0.0
        %637 = vmatprep.subr.mxu0 0.0
        %638 = vmatpush1.msra.mxu0 0.0
        %639 = vmatprep.subr.mxu0 0.0
        %640 = vmatpush1.msra.mxu0 0.0
        %641 = vmatprep.subr.mxu0 0.0
        %642 = vmatpush1.msra.mxu0 0.0
        %643 = vmatprep.subr.mxu0 0.0
        %644 = vmatpush1.msra.mxu0 0.0
        %645 = vmatprep.subr.mxu0 0.0
        %646 = vmatpush1.msra.mxu0 0.0
        %647 = vmatprep.subr.mxu0 0.0
        %648 = vmatpush1.msra.mxu0 0.0
        %649 = vmatprep.subr.mxu0 0.0
        %650 = vmatpush1.msra.mxu0 0.0
        %651 = vmatprep.subr.mxu0 0.0
        %652 = vmatpush1.msra.mxu0 0.0
        %653 = vmatprep.subr.mxu0 0.0
        %654 = vmatpush1.msra.mxu0 0.0
        %655 = vmatprep.subr.mxu0 0.0
        %656 = vmatpush1.msra.mxu0 0.0
        %657 = vmatprep.subr.mxu0 0.0
        %658 = vmatpush1.msra.mxu0 0.0
        %659 = vmatprep.subr.mxu0 0.0
        %660 = vmatpush1.msra.mxu0 0.0
        %661 = vmatprep.subr.mxu0 0.0
        %662 = vmatpush1.msra.mxu0 0.0
        %663 = vmatprep.mubr.f32.mxu0 0.0
        %664 = vmatmul.mubr.f32.gmra.mrb[0].mxu0 %v594
        %v665 = vpop.f32.mrb[0].mxu0
        %v666 = vadd.f32 %v585, %v665
        %v667 = vpop.f32.mrb[0].mxu0
        %668 = vmatprep.mubr.f32.mxu0 0.0
        %669 = vmatmul.mubr.f32.gmra.mrb[0].mxu0 %v597
        %v670 = vpop.f32.mrb[0].mxu0
        %v671 = vadd.f32 %v590, %v670
        %v672 = vpop.f32.mrb[0].mxu0
        %673 = vdwg.mxu0
        %v674 = vadd.f32 %v666, %v436
        %v675 = vadd.f32 %v671, %v437
        %676 = vst [vmem:[%s299] sm:$0xff] %v674
        %677 = vst [vmem:[%s299 + $0x8] sm:$0xff] %v675
        %s678 = sand.u32 %s204, 1
        %s679 = scalar_lea.sflag [#allocation5], %s678
        %s680 = sand.u32 %s204, 1
        %s681 = smul.addr %s680, 16
        %s682 = scalar_lea.vmem [#allocation4], %s681
        // Predicated region
        $region53: #{tpu_custom_call.1} parent=51 // pred_check
          %p683 = pneg %p214
        $region54: #{tpu_custom_call.1} parent=51 // pred_check_branch
          %685 = sbr.rel (%p683) target = $region56
        $region55: #{tpu_custom_call.1} parent=51 // pred_region
          %s687 = ssub.s32 256, 256
          %688 = vsyncadd %s679, %s687
          %s689 = smul.addr %s23, 2
          %s690 = smul.addr %s689, 128
          %s691 = scalar_lea.hbm %s8, %s690
          %s692 = sshll.u32 %s682, 4
          %s693 = int_to_ptr.vmem [resolvable:$true] %s692
          %698 = dma.vmem_to_hbm [thread:$0]  %s693, 256, %s691, %s679, 128, 128, 8
        $region56: #{tpu_custom_call.1} parent=51 // pred_fallthru
          _
      $region52: #{tpu_custom_call.1} parent=5 // pred_fallthru
        _
      %p699 = scmp.le.s32.totalorder 2, %s18
      // Predicated region
      $region57: #{tpu_custom_call.1} parent=5 // pred_check
        %p700 = pneg %p699
      $region58: #{tpu_custom_call.1} parent=5 // pred_check_branch
        %702 = sbr.rel (%p700) target = $region60
      $region59: #{tpu_custom_call.1} parent=5 // pred_region
        %s703 = ssub.s32 %s18, 2
        // Predicated region
        $region61: #{tpu_custom_call.1} parent=59 // pred_check
          %p704 = pneg %p220
        $region62: #{tpu_custom_call.1} parent=59 // pred_check_branch
          %706 = sbr.rel (%p704) target = $region64
        $region63: #{tpu_custom_call.1} parent=59 // pred_region
          %s707 = sand.u32 %s205, 1
          %s708 = scalar_lea.sflag [#allocation5], %s707
          %s709 = sand.u32 %s205, 1
          %s710 = smul.addr %s709, 16
          %s711 = scalar_lea.vmem [#allocation4], %s710
          %712 = dma.done %s708, 256
        $region64: #{tpu_custom_call.1} parent=59 // pred_fallthru
          _
      $region60: #{tpu_custom_call.1} parent=5 // pred_fallthru
        _
    $region6: #{tpu_custom_call.1} parent=1 // loop_footer
      %s22 = sadd.s32 1, %s18
    $region7: #{tpu_custom_call.1} parent=1 // loop_footer_branch
      %17 = sbr.rel target = $region3
    $region8: #{tpu_custom_call.1} parent=1 // loop_exit
      _
    %713 = vsyncpa [#allocation5], 1
    %s714 = scalar_lea.sflag [#allocation5], 1
    %715 = vsyncpa %s714, 1

</llo_original>
